<compile_context>
chip_gen: v7x
topology: tpu7x:2x2x1
jax: 0.10.0
libtpu: 0.0.40
codegen_flags: <defaults>
</compile_context>

<pallas_src>
import functools
import math

import numpy as np
import jax
import jax.numpy as jnp
from jax import lax
from jax.experimental import pallas as pl
from jax.experimental.pallas import tpu as pltpu


def get_positional_encoding(d_model: int, max_len: int = 5000):
    """Same math as the PyTorch helper; returns (max_len, d_model) float32."""
    position = jnp.arange(max_len, dtype=jnp.float32)[:, None]          # (L, 1)
    two_i = jnp.arange(0, d_model, 2, dtype=jnp.float32)                # (D/2,)
    div_term = jnp.exp(two_i * -(math.log(10000.0) / d_model))          # (D/2,)
    angles = position * div_term                                        # (L, D/2)
    enc = jnp.zeros((max_len, d_model), dtype=jnp.float32)
    enc = enc.at[:, 0::2].set(jnp.sin(angles))
    enc = enc.at[:, 1::2].set(jnp.cos(angles))
    return enc                                                          # (L, D) fp32


# ----------------------------------------------------------------------------- kernels

def _broadcast_pe(pe_ref, width_tile):
    """(bs, pe_w) fp32 tile -> (bs, width_tile), repeating with period pe_w (D | pe_w)."""
    pe = pe_ref[...]
    bs, pe_w = pe.shape
    reps = width_tile // pe_w
    if reps > 1:
        # Single broadcast + (lane-aligned when pe_w % 128 == 0) reshape; matches the
        # flattened x column layout col = b*D + d since D divides pe_w.
        pe = lax.broadcast_in_dim(pe, (bs, reps, pe_w), (0, 2)).reshape(bs, reps * pe_w)
    return pe


# splitmix32-style mixer constants as int32 bit patterns (wrap-around arithmetic).
_MIX_C1 = np.uint32(0x7FEB352D).astype(np.int32)
_MIX_C2 = np.uint32(0x846CA68B).astype(np.int32)
_GOLDEN = np.uint32(0x9E3779B9).astype(np.int32)


def _random_bits24(shape, row0, col0, total_width, seed):
    """Portable counter-based PRNG: one pseudo-random value in [0, 2^24) per element.

    Uses only int32 VPU ops (iota/mul/xor/logical shifts) so it lowers on Mosaic and in
    interpret mode alike. Integer wrap-around is intentional.
    """
    r = lax.broadcasted_iota(jnp.int32, shape, 0)
    c = lax.broadcasted_iota(jnp.int32, shape, 1)
    # Scalar part of the per-element global counter, mixed with the seed.
    off = row0 * np.int32(total_width) + col0 + seed * _GOLDEN
    x = r * np.int32(total_width) + c + off
    x = x ^ lax.shift_right_logical(x, np.int32(16))
    x = x * _MIX_C1
    x = x ^ lax.shift_right_logical(x, np.int32(15))
    x = x * _MIX_C2
    x = x ^ lax.shift_right_logical(x, np.int32(16))
    return lax.shift_right_logical(x, np.int32(8))        # top 24 bits, non-negative


def _pe_add_kernel(x_ref, pe_ref, o_ref):
    y = x_ref[...].astype(jnp.float32) + _broadcast_pe(pe_ref, x_ref.shape[-1])
    o_ref[...] = y.astype(o_ref.dtype)


def _pe_add_dropout_kernel(seed_ref, x_ref, pe_ref, o_ref, *, dropout_prob, total_width):
    bs, wt = x_ref.shape
    y = x_ref[...].astype(jnp.float32) + _broadcast_pe(pe_ref, wt)
    # Inverted dropout. Counter-based hash PRNG; RNG stream differs from torch.nn.Dropout
    # but keep-probability / scaling match (p quantized to multiples of 2^-24, negligible).
    # TODO(synk): if profiling on v7x ever shows this path VPU-bound, swap _random_bits24
    # for the hardware PRNG (pltpu.prng_seed + pltpu.prng_random_bits) on-device.
    bits = _random_bits24((bs, wt),
                          row0=pl.program_id(0) * bs,
                          col0=pl.program_id(1) * wt,
                          total_width=total_width,
                          seed=seed_ref[0])
    thresh = np.int32(min(int(round(dropout_prob * (1 << 24))), (1 << 24) - 1))
    scale = np.float32(1.0 / (1.0 - dropout_prob))
    o_ref[...] = jnp.where(bits >= thresh, y * scale, 0.0).astype(o_ref.dtype)


# ----------------------------------------------------------------------------- tiling

def _pe_rep_width(D, width_tile):
    """Width (multiple of D, dividing width_tile) to pre-tile pe to, so the in-kernel
    repeat is made of whole-vreg (128-lane aligned) copies."""
    reps = width_tile // D
    for k in range(1, reps + 1):
        w = k * D
        if width_tile % w == 0 and w % 128 == 0:
            return w
    # No lane-aligned sub-multiple exists (width_tile % 128 != 0 => small widths):
    # pre-tile fully (reps == 1 in-kernel) when cheap, else keep period D.
    return width_tile if width_tile <= 1024 else D


def _choose_tiles(S, B, D, itemsize, vmem_budget_bytes):
    """Pick (block_seq, width_tile, pe_width) for the 2-D (seq, width) grid."""
    width = B * D

    def footprint(bs, wt, pe_w):
        # double-buffered x-in + x-out tiles, plus a double-buffered fp32 pe tile
        return 2 * (2 * bs * wt * itemsize + bs * pe_w * 4)

    # Width tiling only when even an 8-row full-width block blows the budget and the
    # width splits into tiles that are multiples of both D and 128 lanes.
    width_tile = width
    unit = (D * 128) // math.gcd(D, 128)                  # lcm(D, 128)
    if (width % unit == 0 and width // unit >= 2
            and footprint(8, width, D) > vmem_budget_bytes):
        n_units = max(1, int(vmem_budget_bytes // max(footprint(8, unit, D), 1)))
        width_tile = unit * min(n_units, width // unit)
    # TODO(synk): huge widths that are not a multiple of lcm(D, 128) are not width-tiled;
    # they fall back to 8-row full-width blocks (raise vmem_limit_bytes if that happens).

    pe_w = _pe_rep_width(D, width_tile)
    n_w = pl.cdiv(width, width_tile)

    if S <= 8:
        block_seq = S
    else:
        bs = int(vmem_budget_bytes // max(footprint(1, width_tile, pe_w), 1))
        # Keep >= 4 total grid steps when S allows (>= 2 blocks per TensorCore on v7x).
        min_seq_blocks = max(1, -(-4 // n_w))
        bs = min(bs, -(-S // min_seq_blocks))
        bs = max(8, (bs // 8) * 8)                        # sublane (8) aligned
        block_seq = min(bs, S)
    return block_seq, width_tile, pe_w


# ----------------------------------------------------------------------------- wrapper

def fixed_positional_encoding(x, pe_table, *, dropout_prob: float = 0.0, seed: int = 0,
                              block_seq: int | None = None, width_tile: int | None = None,
                              vmem_budget_bytes: int = 32 << 20,
                              vmem_limit_bytes: int | None = None,
                              donate_x: bool = False):
    """x: (S, B, D); pe_table: (max_len >= S, D) fp32. Returns x + pe[:S] (+ dropout).

    donate_x=True aliases x onto the output (halves HBM traffic) — enable only when x is
    actually donated at the jit boundary, otherwise XLA's defensive copy cancels the win.
    Default VMEM budget/limit (32 MiB / 48 MiB) fit every generation incl. v7x (64 MiB).
    """
    S, B, D = x.shape
    if not 0.0 <= dropout_prob <= 1.0:
        raise ValueError(f"dropout_prob must be in [0, 1], got {dropout_prob}")
    if dropout_prob >= 1.0:
        return jnp.zeros_like(x)                          # torch.nn.Dropout(1.0) zeroes all

    width = B * D
    x2 = x.reshape(S, width)                              # lane-dense slab; free reshape

    auto_bs, auto_wt, _ = _choose_tiles(S, B, D, x.dtype.itemsize, vmem_budget_bytes)
    block_seq = auto_bs if block_seq is None else block_seq
    width_tile = auto_wt if width_tile is None else width_tile
    pe_w = _pe_rep_width(D, width_tile)

    pe = pe_table[:S].astype(jnp.float32)                 # fp32 add for precision
    if pe_w != D:
        pe = jnp.tile(pe, (1, pe_w // D))                 # wrapper-side lane-aligned pre-tile

    grid = (pl.cdiv(S, block_seq), pl.cdiv(width, width_tile))

    if vmem_limit_bytes is None:
        vmem_limit_bytes = min(vmem_budget_bytes + (16 << 20), 100 << 20)
    cparams = pltpu.CompilerParams(
        dimension_semantics=("parallel", "parallel"),
        vmem_limit_bytes=int(vmem_limit_bytes))
    cost = pl.CostEstimate(
        flops=2 * S * width, transcendentals=0,
        bytes_accessed=2 * S * width * x.dtype.itemsize + S * pe_w * 4)
    out_shape = jax.ShapeDtypeStruct((S, width), x.dtype)

    if dropout_prob == 0.0:
        x_spec = pl.BlockSpec((block_seq, width_tile), lambda i, j: (i, j))
        pe_spec = pl.BlockSpec((block_seq, pe_w), lambda i, j: (i, 0))
        out2 = pl.pallas_call(
            _pe_add_kernel,
            out_shape=out_shape,
            grid_spec=pl.GridSpec(grid=grid, in_specs=[x_spec, pe_spec], out_specs=x_spec),
            input_output_aliases={0: 0} if donate_x else {},
            compiler_params=cparams,
            cost_estimate=cost,
        )(x2, pe)
    else:
        kernel = functools.partial(_pe_add_dropout_kernel,
                                   dropout_prob=float(dropout_prob), total_width=width)
        seed_arr = jnp.asarray([seed], dtype=jnp.int32)
        out2 = pl.pallas_call(
            kernel,
            out_shape=out_shape,
            grid_spec=pltpu.PrefetchScalarGridSpec(
                num_scalar_prefetch=1,
                grid=grid,
                in_specs=[pl.BlockSpec((block_seq, width_tile), lambda i, j, s: (i, j)),
                          pl.BlockSpec((block_seq, pe_w), lambda i, j, s: (i, 0))],
                out_specs=pl.BlockSpec((block_seq, width_tile), lambda i, j, s: (i, j))),
            # flat operand order is [seed, x2, pe] -> alias x2 (index 1) onto the output
            input_output_aliases={1: 0} if donate_x else {},
            compiler_params=cparams,
            cost_estimate=cost,
        )(seed_arr, x2, pe)

    return out2.reshape(S, B, D)


if __name__ == "__main__":
    # Case 1: tiny shapes consistent with the module's forward: (seq=8, batch=2, d_model=32).
    S, B, D = 8, 2, 32
    MAX_LEN = 64
    key = jax.random.PRNGKey(0)
    x = jax.random.normal(key, (S, B, D), dtype=jnp.float32)
    pe_table = get_positional_encoding(D, MAX_LEN)

    ref = x + pe_table[:S][:, None, :]
    out = jax.block_until_ready(fixed_positional_encoding(x, pe_table, dropout_prob=0.0))
    assert out.shape == (S, B, D) and out.dtype == x.dtype
    assert jnp.allclose(out, ref, atol=1e-6, rtol=1e-6)

    # Train-mode smoke test: every element is either dropped (0) or scaled by 1/(1-p).
    p = 0.25
    out_d = jax.block_until_ready(
        fixed_positional_encoding(x, pe_table, dropout_prob=p, seed=123))
    scaled = ref / (1.0 - p)
    ok = jnp.isclose(out_d, 0.0, atol=1e-6) | jnp.isclose(out_d, scaled, rtol=1e-5, atol=1e-5)
    assert bool(jnp.all(ok))

    # Case 2: multi-block shape exercising the 2-D grid + lane-aligned pe broadcast path.
    S2, B2, D2 = 128, 4, 128
    xb = jax.random.normal(jax.random.PRNGKey(1), (S2, B2, D2), dtype=jnp.float32)
    pe2 = get_positional_encoding(D2, 256)
    ref2 = xb + pe2[:S2][:, None, :]
    outb = jax.block_until_ready(
        fixed_positional_encoding(xb, pe2, dropout_prob=0.0, vmem_budget_bytes=1 << 20))
    assert jnp.allclose(outb, ref2, atol=1e-5, rtol=1e-5)

    print("KERNEL_OK")
</pallas_src>

<mosaic_0001>
module attributes {stable_mosaic.version = 11 : i64} {
  func.func @_pe_add_kernel(%arg0: i32, %arg1: i32, %arg2: memref<8x64xf32, #tpu.memory_space<vmem>>, %arg3: memref<8x64xf32, #tpu.memory_space<vmem>>, %arg4: memref<8x64xf32, #tpu.memory_space<vmem>>) attributes {dimension_semantics = [#tpu.dimension_semantics<parallel>, #tpu.dimension_semantics<parallel>], iteration_bounds = array<i64: 1, 1>, scalar_prefetch = 0 : i64, scratch_operands = 0 : i64, tpu.core_type = #tpu.core_type<tc>, window_params = [{transform_indices = @transform_0, window_bounds = array<i64: 8, 64>}, {transform_indices = @transform_1, window_bounds = array<i64: 8, 64>}, {transform_indices = @transform_2, window_bounds = array<i64: 8, 64>}]} {
    %c0 = arith.constant 0 : index
    %c0_0 = arith.constant 0 : index
    %0 = vector.load %arg2[%c0, %c0_0] : memref<8x64xf32, #tpu.memory_space<vmem>>, vector<8x64xf32>
    %c0_1 = arith.constant 0 : index
    %c0_2 = arith.constant 0 : index
    %1 = vector.load %arg3[%c0_1, %c0_2] : memref<8x64xf32, #tpu.memory_space<vmem>>, vector<8x64xf32>
    %2 = arith.addf %0, %1 : vector<8x64xf32>
    %c0_3 = arith.constant 0 : index
    %c0_4 = arith.constant 0 : index
    %3 = vector.load %arg4[%c0_3, %c0_4] : memref<8x64xf32, #tpu.memory_space<vmem>>, vector<8x64xf32>
    tpu.vector_store %arg4[%c0_3, %c0_4], %2 {strides = array<i32>} : memref<8x64xf32, #tpu.memory_space<vmem>>, vector<8x64xf32>,
    return
  }
  func.func @transform_0(%arg0: i32, %arg1: i32) -> (i32, i32) {
    %c0_i32 = arith.constant 0 : i32
    return %arg0, %arg1 : i32, i32
  }
  func.func @transform_1(%arg0: i32, %arg1: i32) -> (i32, i32) {
    %c0_i32 = arith.constant 0 : i32
    %c0_i32_0 = arith.constant 0 : i32
    return %arg0, %c0_i32 : i32, i32
  }
  func.func @transform_2(%arg0: i32, %arg1: i32) -> (i32, i32) {
    %c0_i32 = arith.constant 0 : i32
    return %arg0, %arg1 : i32, i32
  }
}

</mosaic_0001>

<llo_original>
// kernel: tpu_custom_call.1
$region0: #{tpu_custom_call.1}
  #allocation0 [shape = 'u32[]', space=smem, size = 0x4, offset = 0x4, fixed_abs, tag = 'smem constant byte address 0x4 - core index']
  #allocation1 [shape = 'u32[144,128]{1,0:T(1,128)}', space=vmem, size = 0x12000, scoped, tag = 'internal scratch']
  %s0 = inlined_call_operand.hbm [shape: f32[8,64], index: 0, kind: input, shape index: {}]
  %s1 = inlined_call_operand.hbm [shape: f32[8,64], index: 1, kind: input, shape index: {}]
  %s2 = inlined_call_operand.hbm [shape: f32[8,64], index: 2, kind: output, shape index: {}]
  %s3 = sld [smem:[#allocation0]]
  $region26: #{tpu_custom_call.1} parent=0
    _
  %s5 = ssub.s32 1, %s3
  %s6 = scalar_select 0, %s5, %s3
  $region1: #{tpu_custom_call.1} parent=0
    #allocation2 [shape = 'u8[4096]{0}', space=vmem, size = 0x1000, scoped, tag = 'input window, operand 0, single buffered']
    #allocation3 [shape = 's32[1]{0}', space=sflag, size = 0x4, scoped, tag = 'scoped memory for tpu_custom_call.1']
    #allocation4 [shape = 's32[1]{0}', space=sflag, size = 0x4, scoped, tag = 'scoped memory for tpu_custom_call.1']
    #allocation5 [shape = 'u8[4096]{0}', space=vmem, size = 0x1000, scoped, tag = 'input window, operand 1, single buffered']
    #allocation6 [shape = 's32[1]{0}', space=sflag, size = 0x4, scoped, tag = 'scoped memory for tpu_custom_call.1']
    #allocation7 [shape = 'u8[4096]{0}', space=vmem, size = 0x1000, scoped, tag = 'output window, operand 0, single buffered']
    %7 = vsyncpa [#allocation3], 0
    %8 = vsyncpa [#allocation6], 0
    %9 = vsyncpa [#allocation4], 0
    // Predicated region
    $region2: #{tpu_custom_call.1} parent=1 // pred_check
      _
    $region3: #{tpu_custom_call.1} parent=1 // pred_check_branch
      %11 = sbr.rel (0) target = $region5
    $region4: #{tpu_custom_call.1} parent=1 // pred_region
      %s13 = ssub.s32 128, 128
      %14 = vsyncadd [#allocation3], %s13
      %s16 = sshll.u32 [#allocation2], 4
      %s17 = int_to_ptr.vmem [resolvable:$true] %s16
      %19 = dma.hbm_to_vmem [thread:$0]  %s0, 128, %s17, [#allocation3]
    $region5: #{tpu_custom_call.1} parent=1 // pred_fallthru
      _
    // Predicated region
    $region6: #{tpu_custom_call.1} parent=1 // pred_check
      _
    $region7: #{tpu_custom_call.1} parent=1 // pred_check_branch
      %21 = sbr.rel (0) target = $region9
    $region8: #{tpu_custom_call.1} parent=1 // pred_region
      %s23 = ssub.s32 128, 128
      %24 = vsyncadd [#allocation6], %s23
      %s26 = sshll.u32 [#allocation5], 4
      %s27 = int_to_ptr.vmem [resolvable:$true] %s26
      %29 = dma.hbm_to_vmem [thread:$0]  %s1, 128, %s27, [#allocation6]
    $region9: #{tpu_custom_call.1} parent=1 // pred_fallthru
      _
    // Predicated region
    $region10: #{tpu_custom_call.1} parent=1 // pred_check
      _
    $region11: #{tpu_custom_call.1} parent=1 // pred_check_branch
      %31 = sbr.rel (0) target = $region13
    $region12: #{tpu_custom_call.1} parent=1 // pred_region
      %32 = dma.done [#allocation3], 128
    $region13: #{tpu_custom_call.1} parent=1 // pred_fallthru
      _
    // Predicated region
    $region14: #{tpu_custom_call.1} parent=1 // pred_check
      _
    $region15: #{tpu_custom_call.1} parent=1 // pred_check_branch
      %34 = sbr.rel (0) target = $region17
    $region16: #{tpu_custom_call.1} parent=1 // pred_region
      %35 = dma.done [#allocation6], 128
    $region17: #{tpu_custom_call.1} parent=1 // pred_fallthru
      _
    %v36 = vld [vmem:[#allocation2] sm:$0xff]
    %v37 = vld [vmem:[#allocation5] sm:$0xff]
    %v38 = vadd.f32 %v36, %v37
    %vm39 = vcmask 523264
    %40 = vst.msk [vmem:[#allocation7] sm:$0xff] %vm39, %v38
    // Predicated region
    $region18: #{tpu_custom_call.1} parent=1 // pred_check
      _
    $region19: #{tpu_custom_call.1} parent=1 // pred_check_branch
      %42 = sbr.rel (0) target = $region21
    $region20: #{tpu_custom_call.1} parent=1 // pred_region
      %s44 = ssub.s32 128, 128
      %45 = vsyncadd [#allocation4], %s44
      %s47 = sshll.u32 [#allocation7], 4
      %s48 = int_to_ptr.vmem [resolvable:$true] %s47
      %50 = dma.vmem_to_hbm [thread:$0]  %s48, 128, %s2, [#allocation4]
    $region21: #{tpu_custom_call.1} parent=1 // pred_fallthru
      _
    // Predicated region
    $region22: #{tpu_custom_call.1} parent=1 // pred_check
      _
    $region23: #{tpu_custom_call.1} parent=1 // pred_check_branch
      %52 = sbr.rel (0) target = $region25
    $region24: #{tpu_custom_call.1} parent=1 // pred_region
      %53 = dma.done [#allocation4], 128
    $region25: #{tpu_custom_call.1} parent=1 // pred_fallthru
      _
    %54 = vsyncpa [#allocation3], 1
    %55 = vsyncpa [#allocation6], 1
    %56 = vsyncpa [#allocation4], 1

</llo_original>
